<compile_context>
chip_gen: v5e
topology: v5e:2x2
jax: 0.10.0
libtpu: 0.0.40
codegen_flags: <defaults>
</compile_context>

<pallas_src>
import functools

import jax
import jax.numpy as jnp
import numpy as np
from jax import lax
from jax.experimental import pallas as pl
from jax.experimental.pallas import tpu as pltpu


def _round_up(x, m):
    return ((x + m - 1) // m) * m


def bert_embedding_kernel(ids_ref,     # (Rt, 2) int32, VMEM: [:,0]=tok, [:,1]=pos+V
                          table_ref,   # (V+N, D) bf16, VMEM-resident fused table
                          out_ref):    # (Rt, D) out-dtype, VMEM
    """One grid step: fused two-hot bf16 MXU gather of Rt rows (tok + pos)."""
    Rt = out_ref.shape[0]
    T = table_ref.shape[0]          # V + N

    ids = ids_ref[...]              # (Rt, 2)
    tok = ids[:, 0:1]               # (Rt, 1)  in [0, V)
    pos = ids[:, 1:2]               # (Rt, 1)  in [V, V+N)  (pre-offset on host)

    # Two-hot selector: exactly one 1 in the token range and one in the
    # (offset) position range, so a single matmul yields tok_emb + pos_emb.
    col = lax.broadcasted_iota(jnp.int32, (Rt, T), 1)
    sel = ((col == tok) | (col == pos)).astype(jnp.bfloat16)   # (Rt, T) bf16

    # Native bf16 MXU path, f32 accumulation.
    x = jnp.dot(sel, table_ref[...], preferred_element_type=jnp.float32)

    # Dropout is identity at inference; cast once and store a dense block.
    out_ref[...] = x.astype(out_ref.dtype)


@functools.partial(jax.jit, static_argnames=("out_dtype", "row_tile"))
def bert_embedding(token_ids, position_ids, tok_table, pos_table,
                   out_dtype=jnp.bfloat16, row_tile=512):
    B, S = token_ids.shape
    V, D = tok_table.shape
    N, _ = pos_table.shape

    # Fused bf16 table: rows [0, V) = token table, rows [V, V+N) = position
    # table.  Tiny here (48 x 128 bf16 = 12 KiB) -> stays VMEM-resident.
    table = jnp.concatenate([tok_table, pos_table], axis=0).astype(jnp.bfloat16)

    # Flatten (B, S) -> R rows; lane/sublane-dense (Rt, D) output blocks.
    R = B * S
    Rt = min(row_tile, _round_up(R, 16))   # multiple of 16 (bf16 sublane packing)
    R_pad = _round_up(R, Rt)
    # Note for v7x: when R spans multiple tiles the grid has >=2 "parallel"
    # steps, so both TensorCores get work (resident table is replicated per TC).

    ids = jnp.stack(
        [token_ids.reshape(R).astype(jnp.int32),
         position_ids.reshape(R).astype(jnp.int32) + jnp.int32(V)],
        axis=1)                                              # (R, 2)
    if R_pad != R:
        # Padded rows select table row 0 only; they are sliced off below.
        ids = jnp.pad(ids, ((0, R_pad - R), (0, 0)))

    grid_spec = pltpu.PrefetchScalarGridSpec(
        num_scalar_prefetch=0,
        grid=(R_pad // Rt,),
        in_specs=[
            pl.BlockSpec((Rt, 2), lambda i: (i, 0)),
            # Constant block index -> fused table DMA'd once and held in VMEM.
            pl.BlockSpec((V + N, D), lambda i: (0, 0)),
        ],
        out_specs=pl.BlockSpec((Rt, D), lambda i: (i, 0)),
    )

    out_flat = pl.pallas_call(
        bert_embedding_kernel,
        out_shape=jax.ShapeDtypeStruct((R_pad, D), out_dtype),
        grid_spec=grid_spec,
        compiler_params=pltpu.CompilerParams(
            dimension_semantics=("parallel",)),   # disjoint output blocks
    )(ids, table)

    return out_flat[:R].reshape(B, S, D)


if __name__ == "__main__":
    # config
    vocab_size = 32      # config.vocab_size
    hidden_dim = 128     # config.hidden_dim
    n_datasets = 16      # config.n_datasets
    token_id_pad = 0     # config.token_id_pad (padding_idx)
    out_dtype = jnp.bfloat16   # config.dtype
    B, S = 2, 8

    key = jax.random.PRNGKey(0)
    k_tok, k_pos, k_ids, k_pids = jax.random.split(key, 4)

    # nn.Embedding default init: N(0, 1); padding_idx row zeroed.
    tok_table = jax.random.normal(k_tok, (vocab_size, hidden_dim), jnp.float32)
    tok_table = tok_table.at[token_id_pad].set(0.0)
    pos_table = jax.random.normal(k_pos, (n_datasets, hidden_dim), jnp.float32)

    token_ids = jax.random.randint(k_ids, (B, S), 0, vocab_size, jnp.int32)
    position_ids = jax.random.randint(k_pids, (B, S), 0, n_datasets, jnp.int32)

    out = bert_embedding(token_ids, position_ids, tok_table, pos_table,
                         out_dtype=out_dtype)
    out = jax.block_until_ready(out)

    # pure-JAX reference (f32 gather + add, then cast) -- kernel gathers from a
    # bf16 table, so allow bf16-level tolerance.
    ref = (tok_table[token_ids] + pos_table[position_ids]).astype(out_dtype)
    np.testing.assert_allclose(np.asarray(out, dtype=np.float32),
                               np.asarray(ref, dtype=np.float32),
                               rtol=2e-2, atol=5e-2)

    assert out.shape == (B, S, hidden_dim) and out.dtype == out_dtype
    print("KERNEL_OK")
</pallas_src>

<mosaic_0001>
module attributes {stable_mosaic.version = 11 : i64} {
  func.func @bert_embedding_kernel(%arg0: i32, %arg1: memref<16x2xi32, #tpu.memory_space<vmem>>, %arg2: memref<48x128xbf16, #tpu.memory_space<vmem>>, %arg3: memref<16x128xbf16, #tpu.memory_space<vmem>>) attributes {dimension_semantics = [#tpu.dimension_semantics<parallel>], iteration_bounds = array<i64: 1>, scalar_prefetch = 0 : i64, scratch_operands = 0 : i64, tpu.core_type = #tpu.core_type<tc>, window_params = [{transform_indices = @transform_0, window_bounds = array<i64: 16, 2>}, {pipeline_mode = #tpu.pipeline_mode<synchronous>, transform_indices = @transform_1, window_bounds = array<i64: 48, 128>}, {transform_indices = @transform_2, window_bounds = array<i64: 16, 128>}]} {
    %c0 = arith.constant 0 : index
    %c0_0 = arith.constant 0 : index
    %0 = vector.load %arg1[%c0, %c0_0] : memref<16x2xi32, #tpu.memory_space<vmem>>, vector<16x2xi32>
    %1 = vector.extract_strided_slice %0 {offsets = [0, 0], sizes = [16, 1], strides = [1, 1]} : vector<16x2xi32> to vector<16x1xi32>
    %2 = vector.extract_strided_slice %0 {offsets = [0, 1], sizes = [16, 1], strides = [1, 1]} : vector<16x2xi32> to vector<16x1xi32>
    %3 = tpu.iota {dimensions = array<i32: 1>} : vector<16x48xi32>
    %4 = vector.broadcast %1 : vector<16x1xi32> to vector<16x48xi32>
    %5 = arith.cmpi eq, %3, %4 : vector<16x48xi32>
    %6 = vector.broadcast %2 : vector<16x1xi32> to vector<16x48xi32>
    %7 = arith.cmpi eq, %3, %6 : vector<16x48xi32>
    %8 = arith.ori %5, %7 : vector<16x48xi1>
    %9 = arith.extui %8 : vector<16x48xi1> to vector<16x48xi32>
    %10 = arith.sitofp %9 : vector<16x48xi32> to vector<16x48xf32>
    %11 = arith.truncf %10 : vector<16x48xf32> to vector<16x48xbf16>
    %c0_1 = arith.constant 0 : index
    %c0_2 = arith.constant 0 : index
    %12 = vector.load %arg2[%c0_1, %c0_2] : memref<48x128xbf16, #tpu.memory_space<vmem>>, vector<48x128xbf16>
    %cst = arith.constant dense<0.000000e+00> : vector<16x128xf32>
    %13 = tpu.matmul %11, %12, %cst {dimension_numbers = #tpu.dot_dimension_numbers<[1], [0], [0], [1], [0, 0, 1, 1], [], []>} : vector<16x48xbf16>, vector<48x128xbf16>, vector<16x128xf32> -> vector<16x128xf32>
    %14 = arith.truncf %13 : vector<16x128xf32> to vector<16x128xbf16>
    %c0_3 = arith.constant 0 : index
    %c0_4 = arith.constant 0 : index
    %15 = vector.load %arg3[%c0_3, %c0_4] : memref<16x128xbf16, #tpu.memory_space<vmem>>, vector<16x128xbf16>
    tpu.vector_store %arg3[%c0_3, %c0_4], %14 {strides = array<i32>} : memref<16x128xbf16, #tpu.memory_space<vmem>>, vector<16x128xbf16>,
    return
  }
  func.func @transform_0(%arg0: i32) -> (i32, i32) {
    %c0_i32 = arith.constant 0 : i32
    %c0_i32_0 = arith.constant 0 : i32
    return %arg0, %c0_i32 : i32, i32
  }
  func.func @transform_1(%arg0: i32) -> (i32, i32) {
    %c0_i32 = arith.constant 0 : i32
    %c0_i32_0 = arith.constant 0 : i32
    %c0_i32_1 = arith.constant 0 : i32
    return %c0_i32, %c0_i32_0 : i32, i32
  }
  func.func @transform_2(%arg0: i32) -> (i32, i32) {
    %c0_i32 = arith.constant 0 : i32
    %c0_i32_0 = arith.constant 0 : i32
    return %arg0, %c0_i32 : i32, i32
  }
}

</mosaic_0001>

<llo_original>
// kernel: bert_embedding.1
$region0: #{bert_embedding.1}
  #allocation0 [shape = 'u32[]', space=smem, size = 0x4, offset = 0x4, fixed_abs, tag = 'smem constant byte address 0x4 - core index']
  #allocation1 [shape = 'u32[72,128]{1,0:T(1,128)}', space=vmem, size = 0x9000, scoped, tag = 'internal scratch']
  %s0 = inlined_call_operand.vmem [shape: s32[16,2], index: 0, kind: input, shape index: {}]
  %s1 = inlined_call_operand.vmem [shape: bf16[48,128], index: 1, kind: input, shape index: {}]
  %s2 = inlined_call_operand.hbm [shape: bf16[16,128], index: 2, kind: output, shape index: {}]
  %s3 = sld [smem:[#allocation0]]
  $region18: #{bert_embedding.1} parent=0
    _
  %s5 = ssub.s32 1, %s3
  %s6 = scalar_select 0, %s5, %s3
  $region1: #{bert_embedding.1} parent=0
    #allocation2 [shape = 'u8[4096]{0}', space=vmem, size = 0x1000, scoped, tag = 'output window, operand 0, single buffered']
    #allocation3 [shape = 's32[1]{0}', space=sflag, size = 0x4, scoped, tag = 'scoped memory for bert_embedding.1']
    %7 = vsyncpa [#allocation3], 0
    // Predicated region
    $region2: #{bert_embedding.1} parent=1 // pred_check
      _
    $region3: #{bert_embedding.1} parent=1 // pred_check_branch
      %9 = sbr.rel (0) target = $region5
    $region4: #{bert_embedding.1} parent=1 // pred_region
      _
    $region5: #{bert_embedding.1} parent=1 // pred_fallthru
      _
    // Predicated region
    $region6: #{bert_embedding.1} parent=1 // pred_check
      _
    $region7: #{bert_embedding.1} parent=1 // pred_check_branch
      %11 = sbr.rel (0) target = $region9
    $region8: #{bert_embedding.1} parent=1 // pred_region
      _
    $region9: #{bert_embedding.1} parent=1 // pred_fallthru
      _
    %v13 = vld [vmem:[%s0] sm:$0xff]
    %v14 = vld [vmem:[%s0 + $0x8] sm:$0xff]
    %v15 = vlaneseq
    %v16 = vand.u32 %v15, 127
    %17 = vset.pattern.permute.xlu0 0
    %18 = vperm.xlu0 %17, %v13
    %v19 = vpop.permute.xlu0 %18
    %20 = vset.pattern.permute.xlu0 0
    %21 = vperm.xlu0 %20, %v14
    %v22 = vpop.permute.xlu0 %21
    %vm23 = vcmp.eq.s32.totalorder %v16, %v19
    %vm24 = vcmp.eq.s32.totalorder %v16, %v22
    %25 = vset.pattern.permute.xlu0 1
    %26 = vperm.xlu0 %25, %v13
    %v27 = vpop.permute.xlu0 %26
    %28 = vset.pattern.permute.xlu0 1
    %29 = vperm.xlu0 %28, %v14
    %v30 = vpop.permute.xlu0 %29
    %vm31 = vcmp.eq.s32.totalorder %v16, %v27
    %vm32 = vcmp.eq.s32.totalorder %v16, %v30
    %vm33 = vmor %vm23, %vm31
    %vm34 = vmor %vm24, %vm32
    %v35 = vsel %vm33, 1, 0
    %v36 = vsel %vm34, 1, 0
    %v37 = vcvt.s32.f32 %v35
    %v38 = vcvt.s32.f32 %v36
    %v39 = vpack.c.bf16 %v38, %v37
    %v40 = vld [vmem:[%s1] sm:$0xf]
    %v41 = vld [vmem:[%s1 + $0x4] sm:$0xf]
    %v42 = vld [vmem:[%s1 + $0x8] sm:$0xf]
    %v43 = vld [vmem:[%s1 + $0xc] sm:$0xf]
    %v44 = vld [vmem:[%s1 + $0x10] sm:$0xf]
    %v45 = vld [vmem:[%s1 + $0x14] sm:$0xf]
    %v52 = vunpack.c.l.b16 %v40
    %v53 = vunpack.c.l.b16 %v41
    %v54 = vunpack.c.l.b16 %v42
    %v55 = vunpack.c.l.b16 %v43
    %v56 = vunpack.c.l.b16 %v44
    %v57 = vunpack.c.l.b16 %v45
    %v58 = vpack.c.b16 %v53, %v52
    %v59 = vpack.c.b16 %v55, %v54
    %v60 = vpack.c.b16 %v57, %v56
    %vm64 = vcmask 392192
    %v66 = vsel %vm64, %v39, 0
    %68 = vmatpush.bf16.msra.mxu0 0
    %69 = vmatpush.bf16.msra.mxu0 0
    %70 = vmatpush.bf16.msra.mxu0 0
    %71 = vmatpush.bf16.msra.mxu0 0
    %72 = vmatpush.bf16.msra.mxu0 0
    %73 = vmatpush.bf16.msra.mxu0 %v60
    %74 = vmatpush.bf16.msra.mxu0 %v59
    %75 = vmatpush.bf16.msra.mxu0 %v58
    %76 = vmatmul.bf16.gmra.mxu0 %v66
    %v77 = vpop.f32.mrf.mxu0
    %v78 = vadd.f32 0.0, %v77
    %v79 = vpop.f32.mrf.mxu0
    %v80 = vadd.f32 0.0, %v79
    %81 = vdwg.mxu0
    %v82 = vpack.c.bf16 %v78, %v78
    %v83 = vpack.c.bf16 %v80, %v80
    %84 = vst [vmem:[#allocation2] sm:$0xf] %v82
    %85 = vst [vmem:[#allocation2 + $0x4] sm:$0xf] %v83
    // Predicated region
    $region10: #{bert_embedding.1} parent=1 // pred_check
      _
    $region11: #{bert_embedding.1} parent=1 // pred_check_branch
      %87 = sbr.rel (0) target = $region13
    $region12: #{bert_embedding.1} parent=1 // pred_region
      %89 = vsyncadd [#allocation3], 0
      %s90 = sshll.u32 [#allocation2], 4
      %s91 = int_to_ptr.vmem [resolvable:$true] %s90
      %s92 = sshll.u32 %s2, 4
      %s93 = int_to_ptr.hbm [resolvable:$true] %s92
      %98 = dma.vmem_to_hbm [thread:$0]  %s91, 128, %s93, [#allocation3], 64, 64, 4
    $region13: #{bert_embedding.1} parent=1 // pred_fallthru
      _
    // Predicated region
    $region14: #{bert_embedding.1} parent=1 // pred_check
      _
    $region15: #{bert_embedding.1} parent=1 // pred_check_branch
      %100 = sbr.rel (0) target = $region17
    $region16: #{bert_embedding.1} parent=1 // pred_region
      %102 = dma.done [#allocation3], 128
    $region17: #{bert_embedding.1} parent=1 // pred_fallthru
      _
    %103 = vsyncpa [#allocation3], 1

</llo_original>
